<compile_context>
chip_gen: v5e
topology: v5e:2x2
jax: 0.10.0
libtpu: 0.0.40
codegen_flags: <defaults>
</compile_context>

<pallas_src>
import functools

import jax
import jax.numpy as jnp
import numpy as np
from jax import lax
from jax.experimental import pallas as pl
from jax.experimental.pallas import tpu as pltpu

KH, KW = 5, 5
STRIDE = (1, 3)
PADDING = (2, 3)
DILATION = (2, 3)
CIN, COUT = 3, 64

TM_MAX = 1024  # lane-dim tile for large M (multiple of 128); small M uses one full block


def prepack_params(weight_oihw, bias):
    """One-time parameter prepacking (hoisted out of the per-call forward).

    weight: (Cout, Cin, KH, KW) -> (Cout, KH*KW*Cin), K flattened in (kh, kw, cin)
    order to match the im2col patch order below.  bias: (Cout,) -> (Cout, 1).
    """
    cout = weight_oihw.shape[0]
    w_packed = jnp.transpose(weight_oihw, (0, 2, 3, 1)).reshape(cout, -1)
    b_packed = bias.reshape(cout, 1)
    return w_packed, b_packed


def _im2col_kt(x_nchw, kh, kw, stride, padding, dilation):
    """Build col with shape (K, M): K = KH*KW*Cin (kh, kw, cin order),
    M = N*Ho*Wo (n, ho, wo order).  Pure data rearrangement, no FLOPs."""
    n, c, h, w = x_nchw.shape
    sh, sw = stride
    ph, pw = padding
    dh, dw = dilation
    xp = jnp.pad(x_nchw, ((0, 0), (0, 0), (ph, ph), (pw, pw)))
    ho = (h + 2 * ph - dh * (kh - 1) - 1) // sh + 1
    wo = (w + 2 * pw - dw * (kw - 1) - 1) // sw + 1
    patches = []
    for i in range(kh):
        for j in range(kw):
            p = lax.slice(
                xp,
                (0, 0, i * dh, j * dw),
                (n, c, i * dh + (ho - 1) * sh + 1, j * dw + (wo - 1) * sw + 1),
                (1, 1, sh, sw),
            )  # (N, C, Ho, Wo)
            patches.append(p)
    col = jnp.stack(patches, axis=0)              # (KH*KW, N, C, Ho, Wo)
    col = jnp.transpose(col, (0, 2, 1, 3, 4))     # (KH*KW, C, N, Ho, Wo)
    col = col.reshape(kh * kw * c, n * ho * wo)   # (K, M)
    return col, ho, wo


def _matmul_bias_tanh_kernel(w_ref, b_ref, col_ref, out_ref):
    # Hot path: (Cout, K) @ (K, TM) on the MXU, + bias (VPU), tanh (EUP), all in VMEM.
    acc = jnp.dot(w_ref[...], col_ref[...], preferred_element_type=jnp.float32)
    out_ref[...] = jnp.tanh(acc + b_ref[...])


@functools.partial(jax.jit, static_argnames=())
def model_tanh_forward(x_nchw, w_packed, b_packed):
    n = x_nchw.shape[0]
    cout, k = w_packed.shape

    col, ho, wo = _im2col_kt(x_nchw, KH, KW, STRIDE, PADDING, DILATION)
    m = col.shape[1]

    # One full-extent block for small M; otherwise tile the lane dim with TM_MAX
    # (multiple of 128) and let Pallas mask the partial last block.
    tm = m if m <= TM_MAX else TM_MAX
    grid = (pl.cdiv(m, tm),)

    out = pl.pallas_call(
        _matmul_bias_tanh_kernel,
        out_shape=jax.ShapeDtypeStruct((cout, m), jnp.float32),
        grid=grid,
        in_specs=[
            pl.BlockSpec((cout, k), lambda i: (0, 0)),   # weight, resident
            pl.BlockSpec((cout, 1), lambda i: (0, 0)),   # bias, resident
            pl.BlockSpec((k, tm), lambda i: (0, i)),     # im2col columns
        ],
        out_specs=pl.BlockSpec((cout, tm), lambda i: (0, i)),
        compiler_params=pltpu.CompilerParams(dimension_semantics=("parallel",)),
    )(w_packed, b_packed, col)

    if n == 1:
        return out.reshape(1, cout, ho, wo)           # no transpose needed for N=1
    return jnp.transpose(out.reshape(cout, n, ho, wo), (1, 0, 2, 3))


def _reference(x_nchw, weight_oihw, bias):
    y = lax.conv_general_dilated(
        x_nchw,
        weight_oihw,
        window_strides=STRIDE,
        padding=[(PADDING[0], PADDING[0]), (PADDING[1], PADDING[1])],
        rhs_dilation=DILATION,
        dimension_numbers=("NCHW", "OIHW", "NCHW"),
    )
    return jnp.tanh(y + bias.reshape(1, -1, 1, 1))


if __name__ == "__main__":
    key = jax.random.PRNGKey(0)
    kx, kw_, kb = jax.random.split(key, 3)

    # Small shapes consistent with the module: N=1, Cin=3, small spatial extent.
    x = jax.random.normal(kx, (1, CIN, 32, 48), dtype=jnp.float32)

    # Deterministic parameter init (PyTorch-style uniform bound = 1/sqrt(fan_in)).
    fan_in = CIN * KH * KW
    bound = 1.0 / np.sqrt(fan_in)
    weight = jax.random.uniform(
        kw_, (COUT, CIN, KH, KW), minval=-bound, maxval=bound, dtype=jnp.float32
    )
    bias = jax.random.uniform(kb, (COUT,), minval=-bound, maxval=bound, dtype=jnp.float32)

    # One-time prepack (static parameters), then run the forward.
    w_packed, b_packed = prepack_params(weight, bias)
    y = model_tanh_forward(x, w_packed, b_packed)
    y = jax.block_until_ready(y)

    y_ref = jax.block_until_ready(_reference(x, weight, bias))
    np.testing.assert_allclose(np.asarray(y), np.asarray(y_ref), rtol=1e-4, atol=1e-4)

    print("KERNEL_OK")
</pallas_src>

<mosaic_0001>
module attributes {stable_mosaic.version = 11 : i64} {
  func.func @_matmul_bias_tanh_kernel(%arg0: i32, %arg1: memref<64x75xf32, #tpu.memory_space<vmem>>, %arg2: memref<64x1xf32, #tpu.memory_space<vmem>>, %arg3: memref<75x392xf32, #tpu.memory_space<vmem>>, %arg4: memref<64x392xf32, #tpu.memory_space<vmem>>) attributes {dimension_semantics = [#tpu.dimension_semantics<parallel>], iteration_bounds = array<i64: 1>, scalar_prefetch = 0 : i64, scratch_operands = 0 : i64, tpu.core_type = #tpu.core_type<tc>, window_params = [{pipeline_mode = #tpu.pipeline_mode<synchronous>, transform_indices = @transform_0, window_bounds = array<i64: 64, 75>}, {pipeline_mode = #tpu.pipeline_mode<synchronous>, transform_indices = @transform_1, window_bounds = array<i64: 64, 1>}, {transform_indices = @transform_2, window_bounds = array<i64: 75, 392>}, {transform_indices = @transform_3, window_bounds = array<i64: 64, 392>}]} {
    %c0 = arith.constant 0 : index
    %c0_0 = arith.constant 0 : index
    %0 = vector.load %arg1[%c0, %c0_0] : memref<64x75xf32, #tpu.memory_space<vmem>>, vector<64x75xf32>
    %c0_1 = arith.constant 0 : index
    %c0_2 = arith.constant 0 : index
    %1 = vector.load %arg3[%c0_1, %c0_2] : memref<75x392xf32, #tpu.memory_space<vmem>>, vector<75x392xf32>
    %cst = arith.constant dense<0.000000e+00> : vector<64x392xf32>
    %2 = tpu.matmul %0, %1, %cst {dimension_numbers = #tpu.dot_dimension_numbers<[1], [0], [0], [1], [0, 0, 1, 1], [], []>} : vector<64x75xf32>, vector<75x392xf32>, vector<64x392xf32> -> vector<64x392xf32>
    %c0_3 = arith.constant 0 : index
    %c0_4 = arith.constant 0 : index
    %3 = vector.load %arg2[%c0_3, %c0_4] : memref<64x1xf32, #tpu.memory_space<vmem>>, vector<64x1xf32>
    %4 = vector.broadcast %3 : vector<64x1xf32> to vector<64x392xf32>
    %5 = arith.addf %2, %4 : vector<64x392xf32>
    %6 = math.tanh %5 : vector<64x392xf32>
    %c0_5 = arith.constant 0 : index
    %c0_6 = arith.constant 0 : index
    %7 = vector.load %arg4[%c0_5, %c0_6] : memref<64x392xf32, #tpu.memory_space<vmem>>, vector<64x392xf32>
    tpu.vector_store %arg4[%c0_5, %c0_6], %6 {strides = array<i32>} : memref<64x392xf32, #tpu.memory_space<vmem>>, vector<64x392xf32>,
    return
  }
  func.func @transform_0(%arg0: i32) -> (i32, i32) {
    %c0_i32 = arith.constant 0 : i32
    %c0_i32_0 = arith.constant 0 : i32
    %c0_i32_1 = arith.constant 0 : i32
    return %c0_i32, %c0_i32_0 : i32, i32
  }
  func.func @transform_1(%arg0: i32) -> (i32, i32) {
    %c0_i32 = arith.constant 0 : i32
    %c0_i32_0 = arith.constant 0 : i32
    %c0_i32_1 = arith.constant 0 : i32
    return %c0_i32, %c0_i32_0 : i32, i32
  }
  func.func @transform_2(%arg0: i32) -> (i32, i32) {
    %c0_i32 = arith.constant 0 : i32
    %c0_i32_0 = arith.constant 0 : i32
    return %c0_i32, %arg0 : i32, i32
  }
  func.func @transform_3(%arg0: i32) -> (i32, i32) {
    %c0_i32 = arith.constant 0 : i32
    %c0_i32_0 = arith.constant 0 : i32
    return %c0_i32, %arg0 : i32, i32
  }
}

</mosaic_0001>

<llo_original>
// kernel: model_tanh_forward.1
$region0: #{model_tanh_forward.1}
  #allocation0 [shape = 'u32[]', space=smem, size = 0x4, offset = 0x4, fixed_abs, tag = 'smem constant byte address 0x4 - core index']
  #allocation1 [shape = 'u32[72,128]{1,0:T(1,128)}', space=vmem, size = 0x9000, scoped, tag = 'internal scratch']
  %s0 = inlined_call_operand.vmem [shape: f32[64,75], index: 0, kind: input, shape index: {}]
  %s1 = inlined_call_operand.vmem [shape: f32[64,1], index: 1, kind: input, shape index: {}]
  %s2 = inlined_call_operand.vmem [shape: f32[75,392], index: 2, kind: input, shape index: {}]
  %s3 = inlined_call_operand.vmem [shape: f32[64,392], index: 3, kind: output, shape index: {}]
  %s4 = sld [smem:[#allocation0]]
  $region22: #{model_tanh_forward.1} parent=0
    _
  %s6 = ssub.s32 1, %s4
  %s7 = scalar_select 0, %s6, %s4
  // Predicated region
  $region2: #{model_tanh_forward.1} parent=0 // pred_check
    _
  $region3: #{model_tanh_forward.1} parent=0 // pred_check_branch
    %9 = sbr.rel (0) target = $region5
  $region4: #{model_tanh_forward.1} parent=0 // pred_region
    _
  $region5: #{model_tanh_forward.1} parent=0 // pred_fallthru
    _
  // Predicated region
  $region6: #{model_tanh_forward.1} parent=0 // pred_check
    _
  $region7: #{model_tanh_forward.1} parent=0 // pred_check_branch
    %11 = sbr.rel (0) target = $region9
  $region8: #{model_tanh_forward.1} parent=0 // pred_region
    _
  $region9: #{model_tanh_forward.1} parent=0 // pred_fallthru
    _
  // Predicated region
  $region10: #{model_tanh_forward.1} parent=0 // pred_check
    _
  $region11: #{model_tanh_forward.1} parent=0 // pred_check_branch
    %13 = sbr.rel (0) target = $region13
  $region12: #{model_tanh_forward.1} parent=0 // pred_region
    _
  $region13: #{model_tanh_forward.1} parent=0 // pred_fallthru
    _
  %v14 = vld [vmem:[%s0] sm:$0xff]
  %v15 = vld [vmem:[%s0 + $0x8] sm:$0xff]
  %v16 = vld [vmem:[%s0 + $0x10] sm:$0xff]
  %v17 = vld [vmem:[%s0 + $0x18] sm:$0xff]
  %v18 = vld [vmem:[%s0 + $0x20] sm:$0xff]
  %v19 = vld [vmem:[%s0 + $0x28] sm:$0xff]
  %v20 = vld [vmem:[%s0 + $0x30] sm:$0xff]
  %v21 = vld [vmem:[%s0 + $0x38] sm:$0xff]
  %v22 = vld [vmem:[%s2] sm:$0xff]
  %v23 = vld [vmem:[%s2 + $0x8] sm:$0xff]
  %v24 = vld [vmem:[%s2 + $0x10] sm:$0xff]
  %v25 = vld [vmem:[%s2 + $0x18] sm:$0xff]
  %v26 = vld [vmem:[%s2 + $0x20] sm:$0xff]
  %v27 = vld [vmem:[%s2 + $0x28] sm:$0xff]
  %v28 = vld [vmem:[%s2 + $0x30] sm:$0xff]
  %v29 = vld [vmem:[%s2 + $0x38] sm:$0xff]
  %v30 = vld [vmem:[%s2 + $0x40] sm:$0xff]
  %v31 = vld [vmem:[%s2 + $0x48] sm:$0xff]
  %v32 = vld [vmem:[%s2 + $0x50] sm:$0xff]
  %v33 = vld [vmem:[%s2 + $0x58] sm:$0xff]
  %v34 = vld [vmem:[%s2 + $0x60] sm:$0xff]
  %v35 = vld [vmem:[%s2 + $0x68] sm:$0xff]
  %v36 = vld [vmem:[%s2 + $0x70] sm:$0xff]
  %v37 = vld [vmem:[%s2 + $0x78] sm:$0xff]
  %v38 = vld [vmem:[%s2 + $0x80] sm:$0xff]
  %v39 = vld [vmem:[%s2 + $0x88] sm:$0xff]
  %v40 = vld [vmem:[%s2 + $0x90] sm:$0xff]
  %v41 = vld [vmem:[%s2 + $0x98] sm:$0xff]
  %v42 = vld [vmem:[%s2 + $0xa0] sm:$0xff]
  %v43 = vld [vmem:[%s2 + $0xa8] sm:$0xff]
  %v44 = vld [vmem:[%s2 + $0xb0] sm:$0xff]
  %v45 = vld [vmem:[%s2 + $0xb8] sm:$0xff]
  %v46 = vld [vmem:[%s2 + $0xc0] sm:$0xff]
  %v47 = vld [vmem:[%s2 + $0xc8] sm:$0xff]
  %v48 = vld [vmem:[%s2 + $0xd0] sm:$0xff]
  %v49 = vld [vmem:[%s2 + $0xd8] sm:$0xff]
  %v50 = vld [vmem:[%s2 + $0xe0] sm:$0xff]
  %v51 = vld [vmem:[%s2 + $0xe8] sm:$0xff]
  %v52 = vld [vmem:[%s2 + $0xf0] sm:$0xff]
  %v53 = vld [vmem:[%s2 + $0xf8] sm:$0xff]
  %v54 = vld [vmem:[%s2 + $0x100] sm:$0xff]
  %v55 = vld [vmem:[%s2 + $0x108] sm:$0xff]
  %v56 = vld [vmem:[%s2 + $0x110] sm:$0xff]
  %v57 = vld [vmem:[%s2 + $0x118] sm:$0xff]
  %v58 = vld [vmem:[%s2 + $0x120] sm:$0x7]
  %v59 = vld [vmem:[%s2 + $0x128] sm:$0x7]
  %v60 = vld [vmem:[%s2 + $0x130] sm:$0x7]
  %v61 = vld [vmem:[%s2 + $0x138] sm:$0x7]
  %v62 = vld [vmem:[%s1] sm:$0xff]
  %v63 = vld [vmem:[%s1 + $0x8] sm:$0xff]
  %v64 = vld [vmem:[%s1 + $0x10] sm:$0xff]
  %v65 = vld [vmem:[%s1 + $0x18] sm:$0xff]
  %v66 = vld [vmem:[%s1 + $0x20] sm:$0xff]
  %v67 = vld [vmem:[%s1 + $0x28] sm:$0xff]
  %v68 = vld [vmem:[%s1 + $0x30] sm:$0xff]
  %v69 = vld [vmem:[%s1 + $0x38] sm:$0xff]
  %71 = vset.pattern.permute.xlu0 0
  %72 = vperm.xlu0 %71, %v62
  %v73 = vpop.permute.xlu0 %72
  %76 = vset.pattern.permute.xlu0 0
  %77 = vperm.xlu0 %76, %v63
  %v78 = vpop.permute.xlu0 %77
  %81 = vset.pattern.permute.xlu0 0
  %82 = vperm.xlu0 %81, %v64
  %v83 = vpop.permute.xlu0 %82
  %86 = vset.pattern.permute.xlu0 0
  %87 = vperm.xlu0 %86, %v65
  %v88 = vpop.permute.xlu0 %87
  %91 = vset.pattern.permute.xlu0 0
  %92 = vperm.xlu0 %91, %v66
  %v93 = vpop.permute.xlu0 %92
  %96 = vset.pattern.permute.xlu0 0
  %97 = vperm.xlu0 %96, %v67
  %v98 = vpop.permute.xlu0 %97
  %101 = vset.pattern.permute.xlu0 0
  %102 = vperm.xlu0 %101, %v68
  %v103 = vpop.permute.xlu0 %102
  %106 = vset.pattern.permute.xlu0 0
  %107 = vperm.xlu0 %106, %v69
  %v108 = vpop.permute.xlu0 %107
  %vm110 = vcmask 613376
  %v112 = vsel %vm110, %v14, 0
  %v115 = vsel %vm110, %v15, 0
  %v118 = vsel %vm110, %v16, 0
  %v121 = vsel %vm110, %v17, 0
  %v124 = vsel %vm110, %v18, 0
  %v127 = vsel %vm110, %v19, 0
  %v130 = vsel %vm110, %v20, 0
  %v133 = vsel %vm110, %v21, 0
  %vm135 = vcmask 1042432
  %v137 = vsel %vm135, %v58, 0
  %v140 = vsel %vm135, %v59, 0
  %v143 = vsel %vm135, %v60, 0
  %v146 = vsel %vm135, %v61, 0
  %148 = vmatpush.msra.mxu0 0.0
  %149 = vmatpush.msra.mxu0 0.0
  %150 = vmatpush.msra.mxu0 0.0
  %151 = vmatpush.msra.mxu0 0.0
  %152 = vmatpush.msra.mxu0 0.0
  %153 = vmatpush.msra.mxu0 0.0
  %154 = vmatpush.msra.mxu0 %v137
  %155 = vmatpush.msra.mxu0 %v54
  %156 = vmatpush.msra.mxu0 %v50
  %157 = vmatpush.msra.mxu0 %v46
  %158 = vmatpush.msra.mxu0 %v42
  %159 = vmatpush.msra.mxu0 %v38
  %160 = vmatpush.msra.mxu0 %v34
  %161 = vmatpush.msra.mxu0 %v30
  %162 = vmatpush.msra.mxu0 %v26
  %163 = vmatpush.msra.mxu0 %v22
  %164 = vmatmul.f32.gmra.mxu0 %v112
  %v165 = vpop.f32.mrf.mxu0
  %v166 = vadd.f32 %v73, %v165
  %167 = vmatmul.f32.gmra.mxu0 %v115
  %v168 = vpop.f32.mrf.mxu0
  %v169 = vadd.f32 %v78, %v168
  %170 = vmatmul.f32.gmra.mxu0 %v118
  %v171 = vpop.f32.mrf.mxu0
  %v172 = vadd.f32 %v83, %v171
  %173 = vmatmul.f32.gmra.mxu0 %v121
  %v174 = vpop.f32.mrf.mxu0
  %v175 = vadd.f32 %v88, %v174
  %176 = vmatmul.f32.gmra.mxu0 %v124
  %v177 = vpop.f32.mrf.mxu0
  %v178 = vadd.f32 %v93, %v177
  %179 = vmatmul.f32.gmra.mxu0 %v127
  %v180 = vpop.f32.mrf.mxu0
  %v181 = vadd.f32 %v98, %v180
  %182 = vmatmul.f32.gmra.mxu0 %v130
  %v183 = vpop.f32.mrf.mxu0
  %v184 = vadd.f32 %v103, %v183
  %185 = vmatmul.f32.gmra.mxu0 %v133
  %v186 = vpop.f32.mrf.mxu0
  %v187 = vadd.f32 %v108, %v186
  %188 = vdwg.mxu0
  %189 = vmatpush.msra.mxu0 0.0
  %190 = vmatpush.msra.mxu0 0.0
  %191 = vmatpush.msra.mxu0 0.0
  %192 = vmatpush.msra.mxu0 0.0
  %193 = vmatpush.msra.mxu0 0.0
  %194 = vmatpush.msra.mxu0 0.0
  %195 = vmatpush.msra.mxu0 %v140
  %196 = vmatpush.msra.mxu0 %v55
  %197 = vmatpush.msra.mxu0 %v51
  %198 = vmatpush.msra.mxu0 %v47
  %199 = vmatpush.msra.mxu0 %v43
  %200 = vmatpush.msra.mxu0 %v39
  %201 = vmatpush.msra.mxu0 %v35
  %202 = vmatpush.msra.mxu0 %v31
  %203 = vmatpush.msra.mxu0 %v27
  %204 = vmatpush.msra.mxu0 %v23
  %205 = vmatmul.f32.gmra.mxu0 %v112
  %v206 = vpop.f32.mrf.mxu0
  %v207 = vadd.f32 %v73, %v206
  %208 = vmatmul.f32.gmra.mxu0 %v115
  %v209 = vpop.f32.mrf.mxu0
  %v210 = vadd.f32 %v78, %v209
  %211 = vmatmul.f32.gmra.mxu0 %v118
  %v212 = vpop.f32.mrf.mxu0
  %v213 = vadd.f32 %v83, %v212
  %214 = vmatmul.f32.gmra.mxu0 %v121
  %v215 = vpop.f32.mrf.mxu0
  %v216 = vadd.f32 %v88, %v215
  %217 = vmatmul.f32.gmra.mxu0 %v124
  %v218 = vpop.f32.mrf.mxu0
  %v219 = vadd.f32 %v93, %v218
  %220 = vmatmul.f32.gmra.mxu0 %v127
  %v221 = vpop.f32.mrf.mxu0
  %v222 = vadd.f32 %v98, %v221
  %223 = vmatmul.f32.gmra.mxu0 %v130
  %v224 = vpop.f32.mrf.mxu0
  %v225 = vadd.f32 %v103, %v224
  %226 = vmatmul.f32.gmra.mxu0 %v133
  %v227 = vpop.f32.mrf.mxu0
  %v228 = vadd.f32 %v108, %v227
  %229 = vdwg.mxu0
  %230 = vmatpush.msra.mxu0 0.0
  %231 = vmatpush.msra.mxu0 0.0
  %232 = vmatpush.msra.mxu0 0.0
  %233 = vmatpush.msra.mxu0 0.0
  %234 = vmatpush.msra.mxu0 0.0
  %235 = vmatpush.msra.mxu0 0.0
  %236 = vmatpush.msra.mxu0 %v143
  %237 = vmatpush.msra.mxu0 %v56
  %238 = vmatpush.msra.mxu0 %v52
  %239 = vmatpush.msra.mxu0 %v48
  %240 = vmatpush.msra.mxu0 %v44
  %241 = vmatpush.msra.mxu0 %v40
  %242 = vmatpush.msra.mxu0 %v36
  %243 = vmatpush.msra.mxu0 %v32
  %244 = vmatpush.msra.mxu0 %v28
  %245 = vmatpush.msra.mxu0 %v24
  %246 = vmatmul.f32.gmra.mxu0 %v112
  %v247 = vpop.f32.mrf.mxu0
  %v248 = vadd.f32 %v73, %v247
  %249 = vmatmul.f32.gmra.mxu0 %v115
  %v250 = vpop.f32.mrf.mxu0
  %v251 = vadd.f32 %v78, %v250
  %252 = vmatmul.f32.gmra.mxu0 %v118
  %v253 = vpop.f32.mrf.mxu0
  %v254 = vadd.f32 %v83, %v253
  %255 = vmatmul.f32.gmra.mxu0 %v121
  %v256 = vpop.f32.mrf.mxu0
  %v257 = vadd.f32 %v88, %v256
  %258 = vmatmul.f32.gmra.mxu0 %v124
  %v259 = vpop.f32.mrf.mxu0
  %v260 = vadd.f32 %v93, %v259
  %261 = vmatmul.f32.gmra.mxu0 %v127
  %v262 = vpop.f32.mrf.mxu0
  %v263 = vadd.f32 %v98, %v262
  %264 = vmatmul.f32.gmra.mxu0 %v130
  %v265 = vpop.f32.mrf.mxu0
  %v266 = vadd.f32 %v103, %v265
  %267 = vmatmul.f32.gmra.mxu0 %v133
  %v268 = vpop.f32.mrf.mxu0
  %v269 = vadd.f32 %v108, %v268
  %270 = vdwg.mxu0
  %271 = vmatpush.msra.mxu0 0.0
  %272 = vmatpush.msra.mxu0 0.0
  %273 = vmatpush.msra.mxu0 0.0
  %274 = vmatpush.msra.mxu0 0.0
  %275 = vmatpush.msra.mxu0 0.0
  %276 = vmatpush.msra.mxu0 0.0
  %277 = vmatpush.msra.mxu0 %v146
  %278 = vmatpush.msra.mxu0 %v57
  %279 = vmatpush.msra.mxu0 %v53
  %280 = vmatpush.msra.mxu0 %v49
  %281 = vmatpush.msra.mxu0 %v45
  %282 = vmatpush.msra.mxu0 %v41
  %283 = vmatpush.msra.mxu0 %v37
  %284 = vmatpush.msra.mxu0 %v33
  %285 = vmatpush.msra.mxu0 %v29
  %286 = vmatpush.msra.mxu0 %v25
  %287 = vmatmul.f32.gmra.mxu0 %v112
  %v288 = vpop.f32.mrf.mxu0
  %v289 = vadd.f32 %v73, %v288
  %290 = vmatmul.f32.gmra.mxu0 %v115
  %v291 = vpop.f32.mrf.mxu0
  %v292 = vadd.f32 %v78, %v291
  %293 = vmatmul.f32.gmra.mxu0 %v118
  %v294 = vpop.f32.mrf.mxu0
  %v295 = vadd.f32 %v83, %v294
  %296 = vmatmul.f32.gmra.mxu0 %v121
  %v297 = vpop.f32.mrf.mxu0
  %v298 = vadd.f32 %v88, %v297
  %299 = vmatmul.f32.gmra.mxu0 %v124
  %v300 = vpop.f32.mrf.mxu0
  %v301 = vadd.f32 %v93, %v300
  %302 = vmatmul.f32.gmra.mxu0 %v127
  %v303 = vpop.f32.mrf.mxu0
  %v304 = vadd.f32 %v98, %v303
  %305 = vmatmul.f32.gmra.mxu0 %v130
  %v306 = vpop.f32.mrf.mxu0
  %v307 = vadd.f32 %v103, %v306
  %308 = vmatmul.f32.gmra.mxu0 %v133
  %v309 = vpop.f32.mrf.mxu0
  %v310 = vadd.f32 %v108, %v309
  %311 = vdwg.mxu0
  %v312 = vtanh.pop %v166
  %v313 = vtanh.pop %v207
  %v314 = vtanh.pop %v248
  %v315 = vtanh.pop %v289
  %v316 = vtanh.pop %v169
  %v317 = vtanh.pop %v210
  %v318 = vtanh.pop %v251
  %v319 = vtanh.pop %v292
  %v320 = vtanh.pop %v172
  %v321 = vtanh.pop %v213
  %v322 = vtanh.pop %v254
  %v323 = vtanh.pop %v295
  %v324 = vtanh.pop %v175
  %v325 = vtanh.pop %v216
  %v326 = vtanh.pop %v257
  %v327 = vtanh.pop %v298
  %v328 = vtanh.pop %v178
  %v329 = vtanh.pop %v219
  %v330 = vtanh.pop %v260
  %v331 = vtanh.pop %v301
  %v332 = vtanh.pop %v181
  %v333 = vtanh.pop %v222
  %v334 = vtanh.pop %v263
  %v335 = vtanh.pop %v304
  %v336 = vtanh.pop %v184
  %v337 = vtanh.pop %v225
  %v338 = vtanh.pop %v266
  %v339 = vtanh.pop %v307
  %v340 = vtanh.pop %v187
  %v341 = vtanh.pop %v228
  %v342 = vtanh.pop %v269
  %v343 = vtanh.pop %v310
  %344 = vst [vmem:[%s3] sm:$0xff] %v312
  %345 = vst [vmem:[%s3 + $0x8] sm:$0xff] %v313
  %346 = vst [vmem:[%s3 + $0x10] sm:$0xff] %v314
  %vm347 = vcmask 64512
  %348 = vst.msk [vmem:[%s3 + $0x18] sm:$0xff] %vm347, %v315
  %349 = vst [vmem:[%s3 + $0x20] sm:$0xff] %v316
  %350 = vst [vmem:[%s3 + $0x28] sm:$0xff] %v317
  %351 = vst [vmem:[%s3 + $0x30] sm:$0xff] %v318
  %352 = vst.msk [vmem:[%s3 + $0x38] sm:$0xff] %vm347, %v319
  %353 = vst [vmem:[%s3 + $0x40] sm:$0xff] %v320
  %354 = vst [vmem:[%s3 + $0x48] sm:$0xff] %v321
  %355 = vst [vmem:[%s3 + $0x50] sm:$0xff] %v322
  %356 = vst.msk [vmem:[%s3 + $0x58] sm:$0xff] %vm347, %v323
  %357 = vst [vmem:[%s3 + $0x60] sm:$0xff] %v324
  %358 = vst [vmem:[%s3 + $0x68] sm:$0xff] %v325
  %359 = vst [vmem:[%s3 + $0x70] sm:$0xff] %v326
  %360 = vst.msk [vmem:[%s3 + $0x78] sm:$0xff] %vm347, %v327
  %361 = vst [vmem:[%s3 + $0x80] sm:$0xff] %v328
  %362 = vst [vmem:[%s3 + $0x88] sm:$0xff] %v329
  %363 = vst [vmem:[%s3 + $0x90] sm:$0xff] %v330
  %364 = vst.msk [vmem:[%s3 + $0x98] sm:$0xff] %vm347, %v331
  %365 = vst [vmem:[%s3 + $0xa0] sm:$0xff] %v332
  %366 = vst [vmem:[%s3 + $0xa8] sm:$0xff] %v333
  %367 = vst [vmem:[%s3 + $0xb0] sm:$0xff] %v334
  %368 = vst.msk [vmem:[%s3 + $0xb8] sm:$0xff] %vm347, %v335
  %369 = vst [vmem:[%s3 + $0xc0] sm:$0xff] %v336
  %370 = vst [vmem:[%s3 + $0xc8] sm:$0xff] %v337
  %371 = vst [vmem:[%s3 + $0xd0] sm:$0xff] %v338
  %372 = vst.msk [vmem:[%s3 + $0xd8] sm:$0xff] %vm347, %v339
  %373 = vst [vmem:[%s3 + $0xe0] sm:$0xff] %v340
  %374 = vst [vmem:[%s3 + $0xe8] sm:$0xff] %v341
  %375 = vst [vmem:[%s3 + $0xf0] sm:$0xff] %v342
  %376 = vst.msk [vmem:[%s3 + $0xf8] sm:$0xff] %vm347, %v343
  // Predicated region
  $region14: #{model_tanh_forward.1} parent=0 // pred_check
    _
  $region15: #{model_tanh_forward.1} parent=0 // pred_check_branch
    %378 = sbr.rel (0) target = $region17
  $region16: #{model_tanh_forward.1} parent=0 // pred_region
    _
  $region17: #{model_tanh_forward.1} parent=0 // pred_fallthru
    _
  // Predicated region
  $region18: #{model_tanh_forward.1} parent=0 // pred_check
    _
  $region19: #{model_tanh_forward.1} parent=0 // pred_check_branch
    %380 = sbr.rel (0) target = $region21
  $region20: #{model_tanh_forward.1} parent=0 // pred_region
    _
  $region21: #{model_tanh_forward.1} parent=0 // pred_fallthru
    _

</llo_original>
